<compile_context>
chip_gen: v7x
topology: tpu7x:2x2x1
jax: 0.10.0
libtpu: 0.0.40
codegen_flags: <defaults>
</compile_context>

<pallas_src>
import functools

import jax
import jax.numpy as jnp
from jax import lax
from jax.experimental import pallas as pl
from jax.experimental.pallas import tpu as pltpu


def _round_up(v, m):
    return (v + m - 1) // m * m


def _pad_amount(kernel_size, padding):
    # Exactly the module's ConstantPad1d behaviour.
    if padding == "same":
        return ((kernel_size - 1) // 2, (kernel_size - 1) // 2)
    if padding == "causal":
        return (kernel_size - 1, 0)
    return (0, 0)  # 'valid'


def _vmem_limit_bytes():
    """Per-generation scoped-VMEM request (v5e/v6e: 128 MiB phys, v7x: 64 MiB)."""
    cap = 64 * 1024 * 1024                      # v7x-safe default
    try:
        info = pltpu.get_tpu_info()
        cap = int(getattr(info, "vmem_capacity_bytes", cap))
    except Exception:
        pass
    return max(32 * 1024 * 1024, min(cap * 3 // 4, 96 * 1024 * 1024))


def _conv_tile_bytes(tl, stride, c_in_pad, c_out_pad, hl, k, in_dsize, act_dsize):
    """VMEM footprint estimate of one Kernel-A grid step (double-buffered)."""
    x_blk = stride * c_in_pad * tl * in_dsize
    halo_blk = stride * c_in_pad * max(hl, 128) * in_dsize      # lane-padded
    y_blk = c_out_pad * tl * act_dsize
    stat_blk = 2 * c_out_pad * 128 * 4
    w_blk = (c_out_pad * c_in_pad + c_in_pad * k + c_in_pad + c_out_pad) * 4
    dbuf = 2 * (x_blk + halo_blk + y_blk + stat_blk + w_blk)
    temps = (stride * c_in_pad * (tl + 128) + c_in_pad * tl + 2 * c_out_pad * tl) * 4
    return dbuf + temps


def _pick_tl(l_out, stride, c_in_pad, c_out_pad, hl, k, in_dsize, act_dsize, budget):
    tl = min(2048, _round_up(max(l_out, 1), 128))
    while tl > 128 and _conv_tile_bytes(tl, stride, c_in_pad, c_out_pad, hl, k,
                                        in_dsize, act_dsize) > budget:
        tl -= 128
    return max(tl, 128)


def _pick_group_b(num_tiles, tl, c_out_pad, act_dsize, budget):
    """Largest divisor of num_tiles whose coarse block fits the VMEM budget."""
    best = 1
    for cand in range(1, num_tiles + 1):
        if num_tiles % cand:
            continue
        per = c_out_pad * cand * tl * (4 * act_dsize + 12)
        if per <= budget:
            best = cand
    return best


# ---------------------------------------------------------------------------
# Kernel A: fused depthwise + pointwise conv, plus per-tile BatchNorm partials.
# ---------------------------------------------------------------------------
def _conv_stats_kernel(x_ref, hx_ref, wdw_ref, bdw_ref, wpw_ref, bpw_ref,
                       y_ref, sum_ref, ssq_ref,
                       *, kernel_size, stride, tl, l_out, num_tiles, mxu_dtype):
    t = pl.program_id(1)                          # L-tile index
    q_max = (kernel_size - 1) // stride

    wdw = wdw_ref[...].astype(jnp.float32)        # (C_in_pad, K)
    c_in_pad = wdw.shape[0]

    # Stitch the main (tl) block with its tiny right-halo so every tap is a
    # contiguous, un-strided lane slice.  VMEM-local copy only; the halo adds
    # just q_max lanes of HBM traffic per tile.
    if q_max > 0:
        xw = jnp.concatenate([x_ref[...], hx_ref[...]], axis=-1)
    else:
        xw = x_ref[...]
    xw = xw.astype(jnp.float32)                   # keep VPU math in f32 (v5e-safe)

    # ---- depthwise conv: K static taps.
    acc = jnp.zeros((c_in_pad, tl), jnp.float32)
    for k in range(kernel_size):
        s, q = k % stride, k // stride
        acc = acc + xw[s, :, q:q + tl] * wdw[:, k:k + 1]
    acc = acc + bdw_ref[...].astype(jnp.float32)  # (C_in_pad, 1) broadcast

    # ---- pointwise 1x1 conv on the MXU; (C, L) layout, no transpose needed.
    y = jnp.dot(wpw_ref[...].astype(mxu_dtype), acc.astype(mxu_dtype),
                preferred_element_type=jnp.float32)     # (C_out_pad, TL)
    y = y + bpw_ref[...].astype(jnp.float32)
    y_ref[...] = y.astype(y_ref.dtype)

    # ---- BatchNorm partial stats per (batch, tile); mask only the last tile.
    rem = l_out - (num_tiles - 1) * tl            # static remainder
    if rem >= tl:                                 # no L padding anywhere
        sum_ref[...] = jnp.sum(y, axis=-1, keepdims=True)
        ssq_ref[...] = jnp.sum(y * y, axis=-1, keepdims=True)
    else:
        @pl.when(t < num_tiles - 1)
        def _full():
            sum_ref[...] = jnp.sum(y, axis=-1, keepdims=True)
            ssq_ref[...] = jnp.sum(y * y, axis=-1, keepdims=True)

        @pl.when(t == num_tiles - 1)
        def _partial():
            lane = lax.broadcasted_iota(jnp.int32, (1, tl), 1)
            ym = y * (lane < rem).astype(jnp.float32)
            sum_ref[...] = jnp.sum(ym, axis=-1, keepdims=True)
            ssq_ref[...] = jnp.sum(ym * y, axis=-1, keepdims=True)


# ---------------------------------------------------------------------------
# Kernel B: folded BatchNorm (per-channel scale/shift) + Swish.
# ---------------------------------------------------------------------------
def _bn_swish_kernel(y_ref, scale_ref, shift_ref, o_ref):
    z = y_ref[...].astype(jnp.float32) * scale_ref[...] + shift_ref[...]
    o_ref[...] = (z * jax.nn.sigmoid(z)).astype(o_ref.dtype)


@functools.partial(jax.jit, static_argnames=("kernel_size", "stride", "padding"))
def depthwise_separable_conv1d(x, params, *, kernel_size, stride, padding):
    eps = 1e-5
    n, c_in, l_in = x.shape
    c_out = params["w_pw"].shape[0]
    k = kernel_size

    pad_l, pad_r = _pad_amount(k, padding)
    l_conv = l_in + pad_l + pad_r
    l_out = (l_conv - k) // stride + 1

    in_dt = x.dtype
    in_dsize = jnp.dtype(in_dt).itemsize
    act_dt = x.dtype                               # bf16 models keep bf16 intermediates
    act_dsize = jnp.dtype(act_dt).itemsize
    # Native MXU path for bf16 models; f32 inputs keep the f32 path (tolerance).
    mxu_dtype = jnp.bfloat16 if in_dt == jnp.bfloat16 else jnp.float32
    f32 = jnp.float32

    # ---- tiling parameters ---------------------------------------------------
    sub = 8 if in_dsize >= 4 else 16               # sublane granularity
    c_in_pad = _round_up(c_in, sub)
    c_out_pad = _round_up(c_out, sub)
    q_max = (k - 1) // stride
    hl = max(q_max, 1)                             # halo width (>=1 to keep shapes sane)

    vmem_limit = _vmem_limit_bytes()
    tl = _pick_tl(l_out, stride, c_in_pad, c_out_pad, hl, k,
                  in_dsize, act_dsize, budget=int(vmem_limit * 0.6))
    num_tiles = pl.cdiv(l_out, tl)
    l_out_pad = num_tiles * tl

    # ---- phase-decomposed input; NO per-tile window materialization ----------
    # xph[n, s, c, j] = x_padded[n, c, j*stride + s]; for stride==1 this is a
    # free reshape of the padded input (no extra HBM pass).
    m_build = num_tiles * tl + hl
    l_total = m_build * stride
    right = pad_r + max(0, l_total - l_conv)
    xp = jnp.pad(x, ((0, 0), (0, c_in_pad - c_in), (pad_l, right)))[:, :, :l_total]
    if stride == 1:
        xph = xp[:, None, :, :]
    else:
        xph = jnp.transpose(xp.reshape(n, c_in_pad, m_build, stride), (0, 3, 1, 2))
    if q_max > 0:
        # Tiny right-halo per tile: xph[..., (t+1)*tl : (t+1)*tl + hl].
        cols = (jnp.arange(num_tiles)[:, None] * tl + tl) + jnp.arange(hl)[None, :]
        halo = jnp.take(xph, cols.reshape(-1), axis=3)
        halo = halo.reshape(n, stride, c_in_pad, num_tiles, hl).transpose(0, 3, 1, 2, 4)
    else:
        halo = jnp.zeros((n, num_tiles, stride, c_in_pad, hl), in_dt)

    # ---- channel-padded parameters --------------------------------------------
    w_dw = jnp.zeros((c_in_pad, k), params["w_dw"].dtype).at[:c_in].set(params["w_dw"])
    b_dw = jnp.zeros((c_in_pad, 1), f32).at[:c_in, 0].set(params["b_dw"].astype(f32))
    w_pw = jnp.zeros((c_out_pad, c_in_pad), params["w_pw"].dtype
                     ).at[:c_out, :c_in].set(params["w_pw"])
    b_pw = jnp.zeros((c_out_pad, 1), f32).at[:c_out, 0].set(params["b_pw"].astype(f32))

    # ---- Kernel A: conv + per-tile BN partial stats ---------------------------
    kern_a = functools.partial(_conv_stats_kernel, kernel_size=k, stride=stride,
                               tl=tl, l_out=l_out, num_tiles=num_tiles,
                               mxu_dtype=mxu_dtype)
    flops_a = 2 * n * l_out_pad * c_in_pad * (k + c_out_pad)
    bytes_a = (in_dsize * (xph.size + halo.size)
               + act_dsize * n * c_out_pad * l_out_pad
               + 4 * (2 * n * num_tiles * c_out_pad + c_out_pad * c_in_pad
                      + c_in_pad * k + c_in_pad + c_out_pad))
    y_full, sums, ssqs = pl.pallas_call(
        kern_a,
        grid=(n, num_tiles),
        in_specs=[
            pl.BlockSpec((None, stride, c_in_pad, tl), lambda i, t: (i, 0, 0, t)),
            pl.BlockSpec((None, None, stride, c_in_pad, hl),
                         lambda i, t: (i, t, 0, 0, 0)),
            pl.BlockSpec((c_in_pad, k), lambda i, t: (0, 0)),
            pl.BlockSpec((c_in_pad, 1), lambda i, t: (0, 0)),
            pl.BlockSpec((c_out_pad, c_in_pad), lambda i, t: (0, 0)),
            pl.BlockSpec((c_out_pad, 1), lambda i, t: (0, 0)),
        ],
        out_specs=(
            pl.BlockSpec((None, c_out_pad, tl), lambda i, t: (i, 0, t)),
            pl.BlockSpec((None, None, c_out_pad, 1), lambda i, t: (i, t, 0, 0)),
            pl.BlockSpec((None, None, c_out_pad, 1), lambda i, t: (i, t, 0, 0)),
        ),
        out_shape=(
            jax.ShapeDtypeStruct((n, c_out_pad, l_out_pad), act_dt),
            jax.ShapeDtypeStruct((n, num_tiles, c_out_pad, 1), f32),
            jax.ShapeDtypeStruct((n, num_tiles, c_out_pad, 1), f32),
        ),
        compiler_params=pltpu.CompilerParams(
            dimension_semantics=("parallel", "parallel"),
            vmem_limit_bytes=vmem_limit),
        cost_estimate=pl.CostEstimate(flops=int(flops_a), transcendentals=0,
                                      bytes_accessed=int(bytes_a)),
    )(xph, halo, w_dw, b_dw, w_pw, b_pw)

    # ---- finalize BatchNorm stats (f32); fold scale/shift into one FMA --------
    count = float(n * l_out)
    mean = jnp.sum(sums, axis=(0, 1)) / count                    # (C_out_pad, 1)
    var = jnp.maximum(jnp.sum(ssqs, axis=(0, 1)) / count - mean * mean, 0.0)
    gamma = jnp.zeros((c_out_pad, 1), f32).at[:c_out, 0].set(params["gamma"].astype(f32))
    beta = jnp.zeros((c_out_pad, 1), f32).at[:c_out, 0].set(params["beta"].astype(f32))
    scale = gamma * lax.rsqrt(var + eps)
    shift = beta - mean * scale
    # TODO(synk): BatchNorm running_mean / running_var buffers are not updated
    # (only the training-mode forward activation is produced).

    # ---- Kernel B: normalize + Swish, coarse blocks, in-place on activation ---
    gb = _pick_group_b(num_tiles, tl, c_out_pad, act_dsize,
                       budget=int(vmem_limit * 0.6))
    tl_b = gb * tl
    num_tiles_b = num_tiles // gb
    out_pad = pl.pallas_call(
        _bn_swish_kernel,
        grid=(n, num_tiles_b),
        in_specs=[
            pl.BlockSpec((None, c_out_pad, tl_b), lambda i, t: (i, 0, t)),
            pl.BlockSpec((c_out_pad, 1), lambda i, t: (0, 0)),
            pl.BlockSpec((c_out_pad, 1), lambda i, t: (0, 0)),
        ],
        out_specs=pl.BlockSpec((None, c_out_pad, tl_b), lambda i, t: (i, 0, t)),
        out_shape=jax.ShapeDtypeStruct((n, c_out_pad, l_out_pad), act_dt),
        input_output_aliases={0: 0},
        compiler_params=pltpu.CompilerParams(
            dimension_semantics=("parallel", "parallel"),
            vmem_limit_bytes=vmem_limit),
        cost_estimate=pl.CostEstimate(
            flops=int(4 * n * c_out_pad * l_out_pad),
            transcendentals=int(n * c_out_pad * l_out_pad),
            bytes_accessed=int(2 * act_dsize * n * c_out_pad * l_out_pad)),
    )(y_full, scale, shift)

    # Output already in x.dtype: pure slice, no convert pass.
    return out_pad[:, :c_out, :l_out]


def reference(x, params, *, kernel_size, stride, padding):
    """Pure-JAX reference mirroring the PyTorch module (training-mode BN)."""
    c_in = x.shape[1]
    x_pad = jnp.pad(x, ((0, 0), (0, 0), _pad_amount(kernel_size, padding)))
    dn = ("NCH", "OIH", "NCH")
    dw = lax.conv_general_dilated(
        x_pad, params["w_dw"].reshape(c_in, 1, kernel_size), (stride,), "VALID",
        dimension_numbers=dn, feature_group_count=c_in)
    dw = dw + params["b_dw"][None, :, None]
    pw = lax.conv_general_dilated(
        dw, params["w_pw"][:, :, None], (1,), "VALID", dimension_numbers=dn)
    pw = pw + params["b_pw"][None, :, None]
    mean = pw.mean(axis=(0, 2), keepdims=True)
    var = ((pw - mean) ** 2).mean(axis=(0, 2), keepdims=True)
    yn = (pw - mean) / jnp.sqrt(var + 1e-5)
    yn = yn * params["gamma"][None, :, None] + params["beta"][None, :, None]
    return yn * jax.nn.sigmoid(yn)


if __name__ == "__main__":
    N, C_IN, C_OUT, L, K, STRIDE, PADDING = 2, 4, 8, 16, 3, 1, "same"

    key = jax.random.PRNGKey(0)
    k0, k1, k2, k3, k4 = jax.random.split(key, 5)
    params = {
        "w_dw": 0.2 * jax.random.normal(k1, (C_IN, K), jnp.float32),
        "b_dw": 0.1 * jax.random.normal(k2, (C_IN,), jnp.float32),
        "w_pw": 0.2 * jax.random.normal(k3, (C_OUT, C_IN), jnp.float32),
        "b_pw": 0.1 * jax.random.normal(k4, (C_OUT,), jnp.float32),
        "gamma": jnp.ones((C_OUT,), jnp.float32),   # BatchNorm affine defaults
        "beta": jnp.zeros((C_OUT,), jnp.float32),
    }
    x = jax.random.normal(k0, (N, C_IN, L), jnp.float32)

    out = depthwise_separable_conv1d(x, params, kernel_size=K, stride=STRIDE,
                                     padding=PADDING)
    out = jax.block_until_ready(out)
    ref = reference(x, params, kernel_size=K, stride=STRIDE, padding=PADDING)
    assert out.shape == (N, C_OUT, L), out.shape
    assert out.dtype == x.dtype, out.dtype
    assert jnp.allclose(out, ref, atol=2e-4, rtol=2e-4), float(jnp.abs(out - ref).max())

    # Also exercise the strided + causal path.
    out2 = depthwise_separable_conv1d(x, params, kernel_size=K, stride=2,
                                      padding="causal")
    out2 = jax.block_until_ready(out2)
    ref2 = reference(x, params, kernel_size=K, stride=2, padding="causal")
    assert out2.shape == ref2.shape, (out2.shape, ref2.shape)
    assert jnp.allclose(out2, ref2, atol=2e-4, rtol=2e-4), float(jnp.abs(out2 - ref2).max())

    print("KERNEL_OK")
</pallas_src>

<mosaic_0001>
module attributes {stable_mosaic.version = 11 : i64} {
  func.func @_conv_stats_kernel(%arg0: i32, %arg1: i32, %arg2: memref<1x1x8x128xf32, #tpu.memory_space<vmem>>, %arg3: memref<1x1x1x8x2xf32, #tpu.memory_space<vmem>>, %arg4: memref<8x3xf32, #tpu.memory_space<vmem>>, %arg5: memref<8x1xf32, #tpu.memory_space<vmem>>, %arg6: memref<8x8xf32, #tpu.memory_space<vmem>>, %arg7: memref<8x1xf32, #tpu.memory_space<vmem>>, %arg8: memref<1x8x128xf32, #tpu.memory_space<vmem>>, %arg9: memref<1x1x8x1xf32, #tpu.memory_space<vmem>>, %arg10: memref<1x1x8x1xf32, #tpu.memory_space<vmem>>) attributes {dimension_semantics = [#tpu.dimension_semantics<parallel>, #tpu.dimension_semantics<parallel>], iteration_bounds = array<i64: 2, 1>, scalar_prefetch = 0 : i64, scratch_operands = 0 : i64, tpu.core_type = #tpu.core_type<tc>, window_params = [{transform_indices = @transform_0, window_bounds = array<i64: 1, 1, 8, 128>}, {transform_indices = @transform_1, window_bounds = array<i64: 1, 1, 1, 8, 2>}, {pipeline_mode = #tpu.pipeline_mode<synchronous>, transform_indices = @transform_2, window_bounds = array<i64: 8, 3>}, {pipeline_mode = #tpu.pipeline_mode<synchronous>, transform_indices = @transform_3, window_bounds = array<i64: 8, 1>}, {pipeline_mode = #tpu.pipeline_mode<synchronous>, transform_indices = @transform_4, window_bounds = array<i64: 8, 8>}, {pipeline_mode = #tpu.pipeline_mode<synchronous>, transform_indices = @transform_5, window_bounds = array<i64: 8, 1>}, {transform_indices = @transform_6, window_bounds = array<i64: 1, 8, 128>}, {transform_indices = @transform_7, window_bounds = array<i64: 1, 1, 8, 1>}, {transform_indices = @transform_8, window_bounds = array<i64: 1, 1, 8, 1>}]} {
    %c0 = arith.constant 0 : index
    %c0_0 = arith.constant 0 : index
    %0 = vector.load %arg4[%c0, %c0_0] : memref<8x3xf32, #tpu.memory_space<vmem>>, vector<8x3xf32>
    %c0_1 = arith.constant 0 : index
    %c0_2 = arith.constant 0 : index
    %c0_3 = arith.constant 0 : index
    %c0_4 = arith.constant 0 : index
    %1 = vector.load %arg2[%c0_1, %c0_2, %c0_3, %c0_4] : memref<1x1x8x128xf32, #tpu.memory_space<vmem>>, vector<1x1x8x128xf32>
    %2 = vector.shape_cast %1 : vector<1x1x8x128xf32> to vector<1x8x128xf32>
    %c0_5 = arith.constant 0 : index
    %c0_6 = arith.constant 0 : index
    %c0_7 = arith.constant 0 : index
    %c0_8 = arith.constant 0 : index
    %c0_9 = arith.constant 0 : index
    %3 = vector.load %arg3[%c0_5, %c0_6, %c0_7, %c0_8, %c0_9] : memref<1x1x1x8x2xf32, #tpu.memory_space<vmem>>, vector<1x1x1x8x2xf32>
    %4 = vector.shape_cast %3 : vector<1x1x1x8x2xf32> to vector<1x8x2xf32>
    %5 = tpu.concatenate %2, %4 in 2 : vector<1x8x128xf32>, vector<1x8x2xf32> -> vector<1x8x130xf32>
    %cst = arith.constant 0.000000e+00 : f32
    %6 = vector.broadcast %cst : f32 to vector<8x128xf32>
    %7 = vector.extract_strided_slice %5 {offsets = [0, 0, 0], sizes = [1, 8, 128], strides = [1, 1, 1]} : vector<1x8x130xf32> to vector<1x8x128xf32>
    %8 = vector.shape_cast %7 : vector<1x8x128xf32> to vector<8x128xf32>
    %9 = vector.extract_strided_slice %0 {offsets = [0, 0], sizes = [8, 1], strides = [1, 1]} : vector<8x3xf32> to vector<8x1xf32>
    %10 = vector.broadcast %9 : vector<8x1xf32> to vector<8x128xf32>
    %11 = arith.mulf %8, %10 : vector<8x128xf32>
    %12 = arith.addf %6, %11 : vector<8x128xf32>
    %13 = vector.extract_strided_slice %5 {offsets = [0, 0, 1], sizes = [1, 8, 128], strides = [1, 1, 1]} : vector<1x8x130xf32> to vector<1x8x128xf32>
    %14 = vector.shape_cast %13 : vector<1x8x128xf32> to vector<8x128xf32>
    %15 = vector.extract_strided_slice %0 {offsets = [0, 1], sizes = [8, 1], strides = [1, 1]} : vector<8x3xf32> to vector<8x1xf32>
    %16 = vector.broadcast %15 : vector<8x1xf32> to vector<8x128xf32>
    %17 = arith.mulf %14, %16 : vector<8x128xf32>
    %18 = arith.addf %12, %17 : vector<8x128xf32>
    %19 = vector.extract_strided_slice %5 {offsets = [0, 0, 2], sizes = [1, 8, 128], strides = [1, 1, 1]} : vector<1x8x130xf32> to vector<1x8x128xf32>
    %20 = vector.shape_cast %19 : vector<1x8x128xf32> to vector<8x128xf32>
    %21 = vector.extract_strided_slice %0 {offsets = [0, 2], sizes = [8, 1], strides = [1, 1]} : vector<8x3xf32> to vector<8x1xf32>
    %22 = vector.broadcast %21 : vector<8x1xf32> to vector<8x128xf32>
    %23 = arith.mulf %20, %22 : vector<8x128xf32>
    %24 = arith.addf %18, %23 : vector<8x128xf32>
    %c0_10 = arith.constant 0 : index
    %c0_11 = arith.constant 0 : index
    %25 = vector.load %arg5[%c0_10, %c0_11] : memref<8x1xf32, #tpu.memory_space<vmem>>, vector<8x1xf32>
    %26 = vector.broadcast %25 : vector<8x1xf32> to vector<8x128xf32>
    %27 = arith.addf %24, %26 : vector<8x128xf32>
    %c0_12 = arith.constant 0 : index
    %c0_13 = arith.constant 0 : index
    %28 = vector.load %arg6[%c0_12, %c0_13] : memref<8x8xf32, #tpu.memory_space<vmem>>, vector<8x8xf32>
    %cst_14 = arith.constant dense<0.000000e+00> : vector<8x128xf32>
    %29 = tpu.matmul %28, %27, %cst_14 {dimension_numbers = #tpu.dot_dimension_numbers<[1], [0], [0], [1], [0, 0, 1, 1], [], []>} : vector<8x8xf32>, vector<8x128xf32>, vector<8x128xf32> -> vector<8x128xf32>
    %c0_15 = arith.constant 0 : index
    %c0_16 = arith.constant 0 : index
    %30 = vector.load %arg7[%c0_15, %c0_16] : memref<8x1xf32, #tpu.memory_space<vmem>>, vector<8x1xf32>
    %31 = vector.broadcast %30 : vector<8x1xf32> to vector<8x128xf32>
    %32 = arith.addf %29, %31 : vector<8x128xf32>
    %c0_17 = arith.constant 0 : index
    %c0_18 = arith.constant 0 : index
    %c0_19 = arith.constant 0 : index
    %33 = vector.load %arg8[%c0_17, %c0_18, %c0_19] : memref<1x8x128xf32, #tpu.memory_space<vmem>>, vector<1x8x128xf32>
    %34 = vector.shape_cast %33 : vector<1x8x128xf32> to vector<8x128xf32>
    %35 = vector.shape_cast %32 : vector<8x128xf32> to vector<1x8x128xf32>
    tpu.vector_store %arg8[%c0_17, %c0_18, %c0_19], %35 {strides = array<i32>} : memref<1x8x128xf32, #tpu.memory_space<vmem>>, vector<1x8x128xf32>,
    %c0_i32 = arith.constant 0 : i32
    %36 = arith.cmpi slt, %arg1, %c0_i32 : i32
    %37 = arith.extui %36 : i1 to i32
    %c0_i32_20 = arith.constant 0 : i32
    %38 = arith.cmpi ne, %37, %c0_i32_20 : i32
    scf.if %38 {
      %cst_23 = arith.constant dense<0.000000e+00> : vector<8xf32>
      %42 = vector.multi_reduction <add>, %32, %cst_23 [1] : vector<8x128xf32> to vector<8xf32>
      %43 = vector.shape_cast %42 : vector<8xf32> to vector<8x1xf32>
      %c0_24 = arith.constant 0 : index
      %c0_25 = arith.constant 0 : index
      %c0_26 = arith.constant 0 : index
      %c0_27 = arith.constant 0 : index
      %44 = vector.load %arg9[%c0_24, %c0_25, %c0_26, %c0_27] : memref<1x1x8x1xf32, #tpu.memory_space<vmem>>, vector<1x1x8x1xf32>
      %45 = vector.shape_cast %44 : vector<1x1x8x1xf32> to vector<8x1xf32>
      %46 = vector.shape_cast %43 : vector<8x1xf32> to vector<1x1x8x1xf32>
      tpu.vector_store %arg9[%c0_24, %c0_25, %c0_26, %c0_27], %46 {strides = array<i32>} : memref<1x1x8x1xf32, #tpu.memory_space<vmem>>, vector<1x1x8x1xf32>,
      %47 = arith.mulf %32, %32 : vector<8x128xf32>
      %cst_28 = arith.constant dense<0.000000e+00> : vector<8xf32>
      %48 = vector.multi_reduction <add>, %47, %cst_28 [1] : vector<8x128xf32> to vector<8xf32>
      %49 = vector.shape_cast %48 : vector<8xf32> to vector<8x1xf32>
      %c0_29 = arith.constant 0 : index
      %c0_30 = arith.constant 0 : index
      %c0_31 = arith.constant 0 : index
      %c0_32 = arith.constant 0 : index
      %50 = vector.load %arg10[%c0_29, %c0_30, %c0_31, %c0_32] : memref<1x1x8x1xf32, #tpu.memory_space<vmem>>, vector<1x1x8x1xf32>
      %51 = vector.shape_cast %50 : vector<1x1x8x1xf32> to vector<8x1xf32>
      %52 = vector.shape_cast %49 : vector<8x1xf32> to vector<1x1x8x1xf32>
      tpu.vector_store %arg10[%c0_29, %c0_30, %c0_31, %c0_32], %52 {strides = array<i32>} : memref<1x1x8x1xf32, #tpu.memory_space<vmem>>, vector<1x1x8x1xf32>,
    } else {
    }
    %c0_i32_21 = arith.constant 0 : i32
    %39 = arith.cmpi eq, %arg1, %c0_i32_21 : i32
    %40 = arith.extui %39 : i1 to i32
    %c0_i32_22 = arith.constant 0 : i32
    %41 = arith.cmpi ne, %40, %c0_i32_22 : i32
    scf.if %41 {
      %42 = tpu.iota {dimensions = array<i32: 1>} : vector<1x128xi32>
      %c16_i32 = arith.constant 16 : i32
      %43 = vector.broadcast %c16_i32 : i32 to vector<1x128xi32>
      %44 = arith.cmpi slt, %42, %43 : vector<1x128xi32>
      %45 = arith.extui %44 : vector<1x128xi1> to vector<1x128xi32>
      %46 = arith.sitofp %45 : vector<1x128xi32> to vector<1x128xf32>
      %47 = vector.broadcast %46 : vector<1x128xf32> to vector<8x128xf32>
      %48 = arith.mulf %32, %47 : vector<8x128xf32>
      %cst_23 = arith.constant dense<0.000000e+00> : vector<8xf32>
      %49 = vector.multi_reduction <add>, %48, %cst_23 [1] : vector<8x128xf32> to vector<8xf32>
      %50 = vector.shape_cast %49 : vector<8xf32> to vector<8x1xf32>
      %c0_24 = arith.constant 0 : index
      %c0_25 = arith.constant 0 : index
      %c0_26 = arith.constant 0 : index
      %c0_27 = arith.constant 0 : index
      %51 = vector.load %arg9[%c0_24, %c0_25, %c0_26, %c0_27] : memref<1x1x8x1xf32, #tpu.memory_space<vmem>>, vector<1x1x8x1xf32>
      %52 = vector.shape_cast %51 : vector<1x1x8x1xf32> to vector<8x1xf32>
      %53 = vector.shape_cast %50 : vector<8x1xf32> to vector<1x1x8x1xf32>
      tpu.vector_store %arg9[%c0_24, %c0_25, %c0_26, %c0_27], %53 {strides = array<i32>} : memref<1x1x8x1xf32, #tpu.memory_space<vmem>>, vector<1x1x8x1xf32>,
      %54 = arith.mulf %48, %32 : vector<8x128xf32>
      %cst_28 = arith.constant dense<0.000000e+00> : vector<8xf32>
      %55 = vector.multi_reduction <add>, %54, %cst_28 [1] : vector<8x128xf32> to vector<8xf32>
      %56 = vector.shape_cast %55 : vector<8xf32> to vector<8x1xf32>
      %c0_29 = arith.constant 0 : index
      %c0_30 = arith.constant 0 : index
      %c0_31 = arith.constant 0 : index
      %c0_32 = arith.constant 0 : index
      %57 = vector.load %arg10[%c0_29, %c0_30, %c0_31, %c0_32] : memref<1x1x8x1xf32, #tpu.memory_space<vmem>>, vector<1x1x8x1xf32>
      %58 = vector.shape_cast %57 : vector<1x1x8x1xf32> to vector<8x1xf32>
      %59 = vector.shape_cast %56 : vector<8x1xf32> to vector<1x1x8x1xf32>
      tpu.vector_store %arg10[%c0_29, %c0_30, %c0_31, %c0_32], %59 {strides = array<i32>} : memref<1x1x8x1xf32, #tpu.memory_space<vmem>>, vector<1x1x8x1xf32>,
    } else {
    }
    return
  }
  func.func @transform_0(%arg0: i32, %arg1: i32) -> (i32, i32, i32, i32) {
    %c0_i32 = arith.constant 0 : i32
    %c0_i32_0 = arith.constant 0 : i32
    %c0_i32_1 = arith.constant 0 : i32
    return %arg0, %c0_i32, %c0_i32_0, %arg1 : i32, i32, i32, i32
  }
  func.func @transform_1(%arg0: i32, %arg1: i32) -> (i32, i32, i32, i32, i32) {
    %c0_i32 = arith.constant 0 : i32
    %c0_i32_0 = arith.constant 0 : i32
    %c0_i32_1 = arith.constant 0 : i32
    %c0_i32_2 = arith.constant 0 : i32
    return %arg0, %arg1, %c0_i32, %c0_i32_0, %c0_i32_1 : i32, i32, i32, i32, i32
  }
  func.func @transform_2(%arg0: i32, %arg1: i32) -> (i32, i32) {
    %c0_i32 = arith.constant 0 : i32
    %c0_i32_0 = arith.constant 0 : i32
    %c0_i32_1 = arith.constant 0 : i32
    return %c0_i32, %c0_i32_0 : i32, i32
  }
  func.func @transform_3(%arg0: i32, %arg1: i32) -> (i32, i32) {
    %c0_i32 = arith.constant 0 : i32
    %c0_i32_0 = arith.constant 0 : i32
    %c0_i32_1 = arith.constant 0 : i32
    return %c0_i32, %c0_i32_0 : i32, i32
  }
  func.func @transform_4(%arg0: i32, %arg1: i32) -> (i32, i32) {
    %c0_i32 = arith.constant 0 : i32
    %c0_i32_0 = arith.constant 0 : i32
    %c0_i32_1 = arith.constant 0 : i32
    return %c0_i32, %c0_i32_0 : i32, i32
  }
  func.func @transform_5(%arg0: i32, %arg1: i32) -> (i32, i32) {
    %c0_i32 = arith.constant 0 : i32
    %c0_i32_0 = arith.constant 0 : i32
    %c0_i32_1 = arith.constant 0 : i32
    return %c0_i32, %c0_i32_0 : i32, i32
  }
  func.func @transform_6(%arg0: i32, %arg1: i32) -> (i32, i32, i32) {
    %c0_i32 = arith.constant 0 : i32
    %c0_i32_0 = arith.constant 0 : i32
    return %arg0, %c0_i32, %arg1 : i32, i32, i32
  }
  func.func @transform_7(%arg0: i32, %arg1: i32) -> (i32, i32, i32, i32) {
    %c0_i32 = arith.constant 0 : i32
    %c0_i32_0 = arith.constant 0 : i32
    %c0_i32_1 = arith.constant 0 : i32
    return %arg0, %arg1, %c0_i32, %c0_i32_0 : i32, i32, i32, i32
  }
  func.func @transform_8(%arg0: i32, %arg1: i32) -> (i32, i32, i32, i32) {
    %c0_i32 = arith.constant 0 : i32
    %c0_i32_0 = arith.constant 0 : i32
    %c0_i32_1 = arith.constant 0 : i32
    return %arg0, %arg1, %c0_i32, %c0_i32_0 : i32, i32, i32, i32
  }
}

module attributes {stable_mosaic.version = 11 : i64} {
  func.func @_bn_swish_kernel(%arg0: i32, %arg1: i32, %arg2: memref<1x8x128xf32, #tpu.memory_space<vmem>>, %arg3: memref<8x1xf32, #tpu.memory_space<vmem>>, %arg4: memref<8x1xf32, #tpu.memory_space<vmem>>, %arg5: memref<1x8x128xf32, #tpu.memory_space<vmem>>) attributes {dimension_semantics = [#tpu.dimension_semantics<parallel>, #tpu.dimension_semantics<parallel>], iteration_bounds = array<i64: 2, 1>, scalar_prefetch = 0 : i64, scratch_operands = 0 : i64, tpu.core_type = #tpu.core_type<tc>, window_params = [{transform_indices = @transform_0, window_bounds = array<i64: 1, 8, 128>}, {pipeline_mode = #tpu.pipeline_mode<synchronous>, transform_indices = @transform_1, window_bounds = array<i64: 8, 1>}, {pipeline_mode = #tpu.pipeline_mode<synchronous>, transform_indices = @transform_2, window_bounds = array<i64: 8, 1>}, {transform_indices = @transform_3, window_bounds = array<i64: 1, 8, 128>}]} {
    %c0 = arith.constant 0 : index
    %c0_0 = arith.constant 0 : index
    %c0_1 = arith.constant 0 : index
    %0 = vector.load %arg2[%c0, %c0_0, %c0_1] : memref<1x8x128xf32, #tpu.memory_space<vmem>>, vector<1x8x128xf32>
    %1 = vector.shape_cast %0 : vector<1x8x128xf32> to vector<8x128xf32>
    %c0_2 = arith.constant 0 : index
    %c0_3 = arith.constant 0 : index
    %2 = vector.load %arg3[%c0_2, %c0_3] : memref<8x1xf32, #tpu.memory_space<vmem>>, vector<8x1xf32>
    %3 = vector.broadcast %2 : vector<8x1xf32> to vector<8x128xf32>
    %4 = arith.mulf %1, %3 : vector<8x128xf32>
    %c0_4 = arith.constant 0 : index
    %c0_5 = arith.constant 0 : index
    %5 = vector.load %arg4[%c0_4, %c0_5] : memref<8x1xf32, #tpu.memory_space<vmem>>, vector<8x1xf32>
    %6 = vector.broadcast %5 : vector<8x1xf32> to vector<8x128xf32>
    %7 = arith.addf %4, %6 : vector<8x128xf32>
    %8 = arith.negf %7 : vector<8x128xf32>
    %9 = math.exp %8 : vector<8x128xf32>
    %cst = arith.constant 1.000000e+00 : f32
    %10 = vector.broadcast %cst : f32 to vector<8x128xf32>
    %11 = arith.addf %10, %9 : vector<8x128xf32>
    %12 = arith.divf %10, %11 : vector<8x128xf32>
    %13 = arith.mulf %7, %12 : vector<8x128xf32>
    %c0_6 = arith.constant 0 : index
    %c0_7 = arith.constant 0 : index
    %c0_8 = arith.constant 0 : index
    %14 = vector.load %arg5[%c0_6, %c0_7, %c0_8] : memref<1x8x128xf32, #tpu.memory_space<vmem>>, vector<1x8x128xf32>
    %15 = vector.shape_cast %14 : vector<1x8x128xf32> to vector<8x128xf32>
    %16 = vector.shape_cast %13 : vector<8x128xf32> to vector<1x8x128xf32>
    tpu.vector_store %arg5[%c0_6, %c0_7, %c0_8], %16 {strides = array<i32>} : memref<1x8x128xf32, #tpu.memory_space<vmem>>, vector<1x8x128xf32>,
    return
  }
  func.func @transform_0(%arg0: i32, %arg1: i32) -> (i32, i32, i32) {
    %c0_i32 = arith.constant 0 : i32
    %c0_i32_0 = arith.constant 0 : i32
    return %arg0, %c0_i32, %arg1 : i32, i32, i32
  }
  func.func @transform_1(%arg0: i32, %arg1: i32) -> (i32, i32) {
    %c0_i32 = arith.constant 0 : i32
    %c0_i32_0 = arith.constant 0 : i32
    %c0_i32_1 = arith.constant 0 : i32
    return %c0_i32, %c0_i32_0 : i32, i32
  }
  func.func @transform_2(%arg0: i32, %arg1: i32) -> (i32, i32) {
    %c0_i32 = arith.constant 0 : i32
    %c0_i32_0 = arith.constant 0 : i32
    %c0_i32_1 = arith.constant 0 : i32
    return %c0_i32, %c0_i32_0 : i32, i32
  }
  func.func @transform_3(%arg0: i32, %arg1: i32) -> (i32, i32, i32) {
    %c0_i32 = arith.constant 0 : i32
    %c0_i32_0 = arith.constant 0 : i32
    return %arg0, %c0_i32, %arg1 : i32, i32, i32
  }
}

</mosaic_0001>

<llo_original>
// kernel: depthwise_separable_conv1d.3
$region0: #{depthwise_separable_conv1d.3}
  #allocation0 [shape = 'u32[]', space=smem, size = 0x4, offset = 0x4, fixed_abs, tag = 'smem constant byte address 0x4 - core index']
  #allocation1 [shape = 'u32[144,128]{1,0:T(1,128)}', space=vmem, size = 0x12000, scoped, tag = 'internal scratch']
  %s0 = inlined_call_operand.vmem [shape: f32[2,8,128], index: 0, kind: input, shape index: {}, may-alias: {0,3}]
  %s1 = inlined_call_operand.vmem [shape: f32[8,1], index: 1, kind: input, shape index: {}]
  %s2 = inlined_call_operand.vmem [shape: f32[8,1], index: 2, kind: input, shape index: {}]
  %s3 = inlined_call_operand.vmem [shape: f32[2,8,128], index: 3, kind: output, shape index: {}, may-alias: {0,3}]
  %s4 = sld [smem:[#allocation0]]
  $region45: #{depthwise_separable_conv1d.3} parent=0
    _
  %s6 = ssub.s32 1, %s4
  %s7 = scalar_select 0, %s6, %s4
  loop: start=0, step=1, limit=4
  $region2: #{depthwise_separable_conv1d.3} parent=0 // loop_pre_header
    _
  $region3: #{depthwise_separable_conv1d.3} parent=0 // loop_header
    %s9 = sphi 0, %s13
    %p10 = scmp.ge.s32.totalorder %s9, 4
    %s16 = sphi 0, %s28
    %s17 = sphi 0, %s24
    %s18 = sphi 0, %s16
    %s19 = sphi 0, %s17
    %s20 = sphi 0, %s18
    %s21 = sphi 0, %s19
    %s33 = sphi 0, %s35
    %s36 = sphi 0, %s33
    %s37 = sphi 0, %s36
    %s53 = sphi 0, %s37
    %s57 = sphi 0, %s57
    %s59 = sphi 0, %s57
    %s60 = sphi 0, %s59
    %s74 = sphi 0, %s60
    %s78 = sphi 0, %s78
    %s80 = sphi 0, %s78
    %s81 = sphi 0, %s80
    %s95 = sphi 0, %s81
    %s103 = sphi 0, %s105
    %s106 = sphi 0, %s103
    %s107 = sphi 0, %s106
    %s123 = sphi 0, %s107
  $region4: #{depthwise_separable_conv1d.3} parent=0 // loop_header_branch
    %12 = sbr.rel (%p10) target = $region8
  $region5: #{depthwise_separable_conv1d.3} parent=0 // loop_body
    %s14 = ssub.s32 %s9, 1
    %s15 = ssub.s32 %s9, 2
    %s22 = sadd.s32 1, %s17
    %p23 = scmp.ge.s32.totalorder %s22, 1
    %s24 = scalar_select %p23, 0, %s22
    %s25 = sadd.s32 1, %s16
    %s26 = scalar_select %p23, %s25, %s16
    %p27 = scmp.ge.s32.totalorder %s26, 2
    %s28 = scalar_select %p27, 0, %s26
    %s29 = ssub.s32 %s16, %s28
    %s30 = ssub.s32 %s17, %s24
    %s31 = sor.u32 %s29, %s30
    %p32 = scmp.eq.s32.totalorder %s31, 0
    %s34 = sadd.s32 %s33, 1
    %s35 = scalar_select %p32, %s33, %s34
    %p38 = pneg %p32
    %p39 = scmp.eq.s32.totalorder %s9, 1
    %p40 = por %p38, %p39
    %p41 = scmp.ne.s32.totalorder %s33, %s36
    %p42 = scmp.eq.s32.totalorder %s9, 0
    %p43 = por %p41, %p42
    %p44 = scmp.ne.s32.totalorder %s33, %s36
    %p45 = scmp.eq.s32.totalorder %s14, 1
    %p46 = por %p44, %p45
    %p47 = scmp.ne.s32.totalorder %s36, %s37
    %p48 = scmp.eq.s32.totalorder %s14, 0
    %p49 = por %p47, %p48
    %p50 = scmp.ne.s32.totalorder %s36, %s37
    %p51 = scmp.eq.s32.totalorder %s15, 1
    %p52 = por %p50, %p51
    %p54 = scmp.ne.s32.totalorder %s37, %s53
    %p55 = scmp.eq.s32.totalorder %s15, 0
    %p56 = por %p54, %p55
    %s58 = sadd.s32 %s57, 1
    %p61 = scmp.eq.s32.totalorder %s9, 1
    %p62 = scmp.ne.s32.totalorder %s57, %s59
    %p63 = scmp.eq.s32.totalorder %s9, 0
    %p64 = por %p62, %p63
    %p65 = scmp.ne.s32.totalorder %s57, %s59
    %p66 = scmp.eq.s32.totalorder %s14, 1
    %p67 = por %p65, %p66
    %p68 = scmp.ne.s32.totalorder %s59, %s60
    %p69 = scmp.eq.s32.totalorder %s14, 0
    %p70 = por %p68, %p69
    %p71 = scmp.ne.s32.totalorder %s59, %s60
    %p72 = scmp.eq.s32.totalorder %s15, 1
    %p73 = por %p71, %p72
    %p75 = scmp.ne.s32.totalorder %s60, %s74
    %p76 = scmp.eq.s32.totalorder %s15, 0
    %p77 = por %p75, %p76
    %s79 = sadd.s32 %s78, 1
    %p82 = scmp.eq.s32.totalorder %s9, 1
    %p83 = scmp.ne.s32.totalorder %s78, %s80
    %p84 = scmp.eq.s32.totalorder %s9, 0
    %p85 = por %p83, %p84
    %p86 = scmp.ne.s32.totalorder %s78, %s80
    %p87 = scmp.eq.s32.totalorder %s14, 1
    %p88 = por %p86, %p87
    %p89 = scmp.ne.s32.totalorder %s80, %s81
    %p90 = scmp.eq.s32.totalorder %s14, 0
    %p91 = por %p89, %p90
    %p92 = scmp.ne.s32.totalorder %s80, %s81
    %p93 = scmp.eq.s32.totalorder %s15, 1
    %p94 = por %p92, %p93
    %p96 = scmp.ne.s32.totalorder %s81, %s95
    %p97 = scmp.eq.s32.totalorder %s15, 0
    %p98 = por %p96, %p97
    %s99 = ssub.s32 %s16, %s28
    %s100 = ssub.s32 %s17, %s24
    %s101 = sor.u32 %s99, %s100
    %p102 = scmp.eq.s32.totalorder %s101, 0
    %s104 = sadd.s32 %s103, 1
    %s105 = scalar_select %p102, %s103, %s104
    %p108 = pneg %p102
    %p109 = scmp.eq.s32.totalorder %s9, 1
    %p110 = por %p108, %p109
    %p111 = scmp.ne.s32.totalorder %s103, %s106
    %p112 = scmp.eq.s32.totalorder %s9, 0
    %p113 = por %p111, %p112
    %p114 = scmp.ne.s32.totalorder %s103, %s106
    %p115 = scmp.eq.s32.totalorder %s14, 1
    %p116 = por %p114, %p115
    %p117 = scmp.ne.s32.totalorder %s106, %s107
    %p118 = scmp.eq.s32.totalorder %s14, 0
    %p119 = por %p117, %p118
    %p120 = scmp.ne.s32.totalorder %s106, %s107
    %p121 = scmp.eq.s32.totalorder %s15, 1
    %p122 = por %p120, %p121
    %p124 = scmp.ne.s32.totalorder %s107, %s123
    %p125 = scmp.eq.s32.totalorder %s15, 0
    %p126 = por %p124, %p125
    %p127 = scmp.le.s32.totalorder 1, %s9
    %p128 = scmp.lt.s32.totalorder %s9, 3
    %p129 = pnand %p127, %p128
    %p130 = pneg %p129
    // Predicated region
    $region9: #{depthwise_separable_conv1d.3} parent=5 // pred_check
      _
    $region10: #{depthwise_separable_conv1d.3} parent=5 // pred_check_branch
      %132 = sbr.rel (%p129) target = $region12
    $region11: #{depthwise_separable_conv1d.3} parent=5 // pred_region
      %s133 = ssub.s32 %s9, 1
      // Predicated region
      $region13: #{depthwise_separable_conv1d.3} parent=11 // pred_check
        %p134 = pneg %p70
      $region14: #{depthwise_separable_conv1d.3} parent=11 // pred_check_branch
        %136 = sbr.rel (%p134) target = $region16
      $region15: #{depthwise_separable_conv1d.3} parent=11 // pred_region
        _
      $region16: #{depthwise_separable_conv1d.3} parent=11 // pred_fallthru
        _
      // Predicated region
      $region17: #{depthwise_separable_conv1d.3} parent=11 // pred_check
        %p137 = pneg %p91
      $region18: #{depthwise_separable_conv1d.3} parent=11 // pred_check_branch
        %139 = sbr.rel (%p137) target = $region20
      $region19: #{depthwise_separable_conv1d.3} parent=11 // pred_region
        _
      $region20: #{depthwise_separable_conv1d.3} parent=11 // pred_fallthru
        _
    $region12: #{depthwise_separable_conv1d.3} parent=5 // pred_fallthru
      _
    %p140 = scmp.lt.s32.totalorder %s9, 2
    // Predicated region
    $region21: #{depthwise_separable_conv1d.3} parent=5 // pred_check
      %p141 = pneg %p140
    $region22: #{depthwise_separable_conv1d.3} parent=5 // pred_check_branch
      %143 = sbr.rel (%p141) target = $region24
    $region23: #{depthwise_separable_conv1d.3} parent=5 // pred_region
      // Predicated region
      $region25: #{depthwise_separable_conv1d.3} parent=23 // pred_check
        %p144 = pneg %p43
      $region26: #{depthwise_separable_conv1d.3} parent=23 // pred_check_branch
        %146 = sbr.rel (%p144) target = $region28
      $region27: #{depthwise_separable_conv1d.3} parent=23 // pred_region
        %p147 = scmp.lt.s32.totalorder %s16, 1
        %s148 = scalar_select %p147, %s16, 1
        %p149 = scmp.lt.s32.totalorder %s17, 0
        %s150 = scalar_select %p149, %s17, 0
        %s151 = sadd.s32 %s150, %s148
        %s152 = smul.addr %s151, 8
        %s153 = scalar_lea.vmem %s0, %s152
      $region28: #{depthwise_separable_conv1d.3} parent=23 // pred_fallthru
        _
    $region24: #{depthwise_separable_conv1d.3} parent=5 // pred_fallthru
      _
    %p154 = scmp.le.s32.totalorder 1, %s9
    %p155 = scmp.lt.s32.totalorder %s9, 3
    %p156 = pnand %p154, %p155
    %p157 = pneg %p156
    // Predicated region
    $region29: #{depthwise_separable_conv1d.3} parent=5 // pred_check
      _
    $region30: #{depthwise_separable_conv1d.3} parent=5 // pred_check_branch
      %159 = sbr.rel (%p156) target = $region32
    $region31: #{depthwise_separable_conv1d.3} parent=5 // pred_region
      %s160 = ssub.s32 %s9, 1
      %p161 = scmp.lt.s32.totalorder %s18, 1
      %s162 = scalar_select %p161, %s18, 1
      %p163 = scmp.lt.s32.totalorder %s19, 0
      %s164 = scalar_select %p163, %s19, 0
      %s165 = sadd.s32 %s164, %s162
      %s166 = smul.addr %s165, 8
      %s167 = scalar_lea.vmem %s0, %s166
      %p168 = pneg %p49
      %p169 = pneg %p46
      %p170 = pneg %p70
      %p171 = pneg %p67
      %p172 = pneg %p91
      %p173 = pneg %p88
      %p174 = pneg %p119
      %p175 = pneg %p116
      %p176 = scmp.lt.s32.totalorder %s18, 1
      %s177 = scalar_select %p176, %s18, 1
      %p178 = scmp.lt.s32.totalorder %s19, 0
      %s179 = scalar_select %p178, %s19, 0
      %s180 = sadd.s32 %s179, %s177
      %s181 = smul.addr %s180, 8
      %s182 = scalar_lea.vmem %s3, %s181
      %p183 = scmp.lt.s32.totalorder %s18, 1
      %s184 = scalar_select %p183, %s18, 1
      %p185 = scmp.lt.s32.totalorder %s19, 0
      %s186 = scalar_select %p185, %s19, 0
      %s187 = sadd.s32 %s186, %s184
      %s188 = smul.addr %s187, 8
      %s189 = scalar_lea.vmem %s0, %s188
      %p190 = scmp.lt.s32.totalorder %s18, 1
      %s191 = scalar_select %p190, %s18, 1
      %p192 = scmp.lt.s32.totalorder %s19, 0
      %s193 = scalar_select %p192, %s19, 0
      %s194 = sadd.s32 %s193, %s191
      %s195 = smul.addr %s194, 8
      %s196 = scalar_lea.vmem %s3, %s195
      %v197 = vld [vmem:[%s189] sm:$0xff]
      %v198 = vld [vmem:[%s1] sm:$0xff]
      %200 = vset.pattern.permute.xlu0 0
      %201 = vperm.xlu0 %200, %v198
      %v202 = vpop.permute.xlu0 %201
      %v204 = vmul.f32 %v197, %v202
      %v205 = vld [vmem:[%s2] sm:$0xff]
      %207 = vset.pattern.permute.xlu0 0
      %208 = vperm.xlu0 %207, %v205
      %v209 = vpop.permute.xlu0 %208
      %v211 = vadd.f32 %v204, %v209
      %v212 = vxor.u32 %v211, 2147483648
      %v213 = vmul.f32 %v212, 1.442695
      %v214 = vpow.pop %v213
      %v215 = vadd.f32 %v214, 1.0
      %v216 = vrcp.pop %v215
      %v217 = vmul.f32 1.0, %v216
      %v218 = vmul.f32 %v211, %v217
      %219 = vst [vmem:[%s196] sm:$0xff] %v218
      %p220 = scmp.lt.s32.totalorder %s18, 1
      %s221 = scalar_select %p220, %s18, 1
      %p222 = scmp.lt.s32.totalorder %s19, 0
      %s223 = scalar_select %p222, %s19, 0
      %s224 = sadd.s32 %s223, %s221
      %s225 = smul.addr %s224, 8
      %s226 = scalar_lea.vmem %s3, %s225
      // Predicated region
      $region33: #{depthwise_separable_conv1d.3} parent=31 // pred_check
        %p227 = pneg %p116
      $region34: #{depthwise_separable_conv1d.3} parent=31 // pred_check_branch
        %229 = sbr.rel (%p227) target = $region36
      $region35: #{depthwise_separable_conv1d.3} parent=31 // pred_region
        _
      $region36: #{depthwise_separable_conv1d.3} parent=31 // pred_fallthru
        _
    $region32: #{depthwise_separable_conv1d.3} parent=5 // pred_fallthru
      _
    %p230 = scmp.le.s32.totalorder 2, %s9
    // Predicated region
    $region37: #{depthwise_separable_conv1d.3} parent=5 // pred_check
      %p231 = pneg %p230
    $region38: #{depthwise_separable_conv1d.3} parent=5 // pred_check_branch
      %233 = sbr.rel (%p231) target = $region40
    $region39: #{depthwise_separable_conv1d.3} parent=5 // pred_region
      %s234 = ssub.s32 %s9, 2
      // Predicated region
      $region41: #{depthwise_separable_conv1d.3} parent=39 // pred_check
        %p235 = pneg %p122
      $region42: #{depthwise_separable_conv1d.3} parent=39 // pred_check_branch
        %237 = sbr.rel (%p235) target = $region44
      $region43: #{depthwise_separable_conv1d.3} parent=39 // pred_region
        %p238 = scmp.lt.s32.totalorder %s20, 1
        %s239 = scalar_select %p238, %s20, 1
        %p240 = scmp.lt.s32.totalorder %s21, 0
        %s241 = scalar_select %p240, %s21, 0
        %s242 = sadd.s32 %s241, %s239
        %s243 = smul.addr %s242, 8
        %s244 = scalar_lea.vmem %s3, %s243
      $region44: #{depthwise_separable_conv1d.3} parent=39 // pred_fallthru
        _
    $region40: #{depthwise_separable_conv1d.3} parent=5 // pred_fallthru
      _
  $region6: #{depthwise_separable_conv1d.3} parent=0 // loop_footer
    %s13 = sadd.s32 1, %s9
  $region7: #{depthwise_separable_conv1d.3} parent=0 // loop_footer_branch
    %8 = sbr.rel target = $region3
  $region8: #{depthwise_separable_conv1d.3} parent=0 // loop_exit
    _

// kernel: depthwise_separable_conv1d.2
$region0: #{depthwise_separable_conv1d.2}
  #allocation0 [shape = 'u32[]', space=smem, size = 0x4, offset = 0x4, fixed_abs, tag = 'smem constant byte address 0x4 - core index']
  #allocation1 [shape = 'u32[144,128]{1,0:T(1,128)}', space=vmem, size = 0x12000, scoped, tag = 'internal scratch']
  %s0 = inlined_call_operand.vmem [shape: f32[2,1,8,130], index: 0, kind: input, shape index: {}]
  %s1 = inlined_call_operand.vmem [shape: f32[2,1,1,8,2], index: 1, kind: input, shape index: {}]
  %s2 = inlined_call_operand.vmem [shape: f32[8,3], index: 2, kind: input, shape index: {}]
  %s3 = inlined_call_operand.vmem [shape: f32[8,1], index: 3, kind: input, shape index: {}]
  %s4 = inlined_call_operand.vmem [shape: f32[8,8], index: 4, kind: input, shape index: {}]
  %s5 = inlined_call_operand.vmem [shape: f32[8,1], index: 5, kind: input, shape index: {}]
  %s6 = inlined_call_operand.vmem [shape: f32[2,8,128], index: 6, kind: output, shape index: {0}]
  %s7 = inlined_call_operand.vmem [shape: f32[2,1,8,1], index: 7, kind: output, shape index: {1}]
  %s8 = inlined_call_operand.vmem [shape: f32[2,1,8,1], index: 8, kind: output, shape index: {2}]
  %9 = xla_tuple %s6, %s7, %s8
  %s10 = sld [smem:[#allocation0]]
  $region81: #{depthwise_separable_conv1d.2} parent=0
    _
  %s12 = ssub.s32 1, %s10
  %s13 = scalar_select 0, %s12, %s10
  loop: start=0, step=1, limit=4
  $region2: #{depthwise_separable_conv1d.2} parent=0 // loop_pre_header
    _
  $region3: #{depthwise_separable_conv1d.2} parent=0 // loop_header
    %s15 = sphi 0, %s19
    %p16 = scmp.ge.s32.totalorder %s15, 4
    %s22 = sphi 0, %s34
    %s23 = sphi 0, %s30
    %s24 = sphi 0, %s22
    %s25 = sphi 0, %s23
    %s26 = sphi 0, %s24
    %s27 = sphi 0, %s25
    %s39 = sphi 0, %s41
    %s42 = sphi 0, %s39
    %s43 = sphi 0, %s42
    %s59 = sphi 0, %s43
    %s67 = sphi 0, %s69
    %s70 = sphi 0, %s67
    %s71 = sphi 0, %s70
    %s87 = sphi 0, %s71
    %s91 = sphi 0, %s91
    %s93 = sphi 0, %s91
    %s94 = sphi 0, %s93
    %s108 = sphi 0, %s94
    %s112 = sphi 0, %s112
    %s114 = sphi 0, %s112
    %s115 = sphi 0, %s114
    %s129 = sphi 0, %s115
    %s133 = sphi 0, %s133
    %s135 = sphi 0, %s133
    %s136 = sphi 0, %s135
    %s150 = sphi 0, %s136
    %s154 = sphi 0, %s154
    %s156 = sphi 0, %s154
    %s157 = sphi 0, %s156
    %s171 = sphi 0, %s157
    %s179 = sphi 0, %s181
    %s182 = sphi 0, %s179
    %s183 = sphi 0, %s182
    %s199 = sphi 0, %s183
    %s207 = sphi 0, %s209
    %s210 = sphi 0, %s207
    %s211 = sphi 0, %s210
    %s227 = sphi 0, %s211
    %s235 = sphi 0, %s237
    %s238 = sphi 0, %s235
    %s239 = sphi 0, %s238
    %s255 = sphi 0, %s239
  $region4: #{depthwise_separable_conv1d.2} parent=0 // loop_header_branch
    %18 = sbr.rel (%p16) target = $region8
  $region5: #{depthwise_separable_conv1d.2} parent=0 // loop_body
    %s20 = ssub.s32 %s15, 1
    %s21 = ssub.s32 %s15, 2
    %s28 = sadd.s32 1, %s23
    %p29 = scmp.ge.s32.totalorder %s28, 1
    %s30 = scalar_select %p29, 0, %s28
    %s31 = sadd.s32 1, %s22
    %s32 = scalar_select %p29, %s31, %s22
    %p33 = scmp.ge.s32.totalorder %s32, 2
    %s34 = scalar_select %p33, 0, %s32
    %s35 = ssub.s32 %s22, %s34
    %s36 = ssub.s32 %s23, %s30
    %s37 = sor.u32 %s35, %s36
    %p38 = scmp.eq.s32.totalorder %s37, 0
    %s40 = sadd.s32 %s39, 1
    %s41 = scalar_select %p38, %s39, %s40
    %p44 = pneg %p38
    %p45 = scmp.eq.s32.totalorder %s15, 1
    %p46 = por %p44, %p45
    %p47 = scmp.ne.s32.totalorder %s39, %s42
    %p48 = scmp.eq.s32.totalorder %s15, 0
    %p49 = por %p47, %p48
    %p50 = scmp.ne.s32.totalorder %s39, %s42
    %p51 = scmp.eq.s32.totalorder %s20, 1
    %p52 = por %p50, %p51
    %p53 = scmp.ne.s32.totalorder %s42, %s43
    %p54 = scmp.eq.s32.totalorder %s20, 0
    %p55 = por %p53, %p54
    %p56 = scmp.ne.s32.totalorder %s42, %s43
    %p57 = scmp.eq.s32.totalorder %s21, 1
    %p58 = por %p56, %p57
    %p60 = scmp.ne.s32.totalorder %s43, %s59
    %p61 = scmp.eq.s32.totalorder %s21, 0
    %p62 = por %p60, %p61
    %s63 = ssub.s32 %s22, %s34
    %s64 = ssub.s32 %s23, %s30
    %s65 = sor.u32 %s63, %s64
    %p66 = scmp.eq.s32.totalorder %s65, 0
    %s68 = sadd.s32 %s67, 1
    %s69 = scalar_select %p66, %s67, %s68
    %p72 = pneg %p66
    %p73 = scmp.eq.s32.totalorder %s15, 1
    %p74 = por %p72, %p73
    %p75 = scmp.ne.s32.totalorder %s67, %s70
    %p76 = scmp.eq.s32.totalorder %s15, 0
    %p77 = por %p75, %p76
    %p78 = scmp.ne.s32.totalorder %s67, %s70
    %p79 = scmp.eq.s32.totalorder %s20, 1
    %p80 = por %p78, %p79
    %p81 = scmp.ne.s32.totalorder %s70, %s71
    %p82 = scmp.eq.s32.totalorder %s20, 0
    %p83 = por %p81, %p82
    %p84 = scmp.ne.s32.totalorder %s70, %s71
    %p85 = scmp.eq.s32.totalorder %s21, 1
    %p86 = por %p84, %p85
    %p88 = scmp.ne.s32.totalorder %s71, %s87
    %p89 = scmp.eq.s32.totalorder %s21, 0
    %p90 = por %p88, %p89
    %s92 = sadd.s32 %s91, 1
    %p95 = scmp.eq.s32.totalorder %s15, 1
    %p96 = scmp.ne.s32.totalorder %s91, %s93
    %p97 = scmp.eq.s32.totalorder %s15, 0
    %p98 = por %p96, %p97
    %p99 = scmp.ne.s32.totalorder %s91, %s93
    %p100 = scmp.eq.s32.totalorder %s20, 1
    %p101 = por %p99, %p100
    %p102 = scmp.ne.s32.totalorder %s93, %s94
    %p103 = scmp.eq.s32.totalorder %s20, 0
    %p104 = por %p102, %p103
    %p105 = scmp.ne.s32.totalorder %s93, %s94
    %p106 = scmp.eq.s32.totalorder %s21, 1
    %p107 = por %p105, %p106
    %p109 = scmp.ne.s32.totalorder %s94, %s108
    %p110 = scmp.eq.s32.totalorder %s21, 0
    %p111 = por %p109, %p110
    %s113 = sadd.s32 %s112, 1
    %p116 = scmp.eq.s32.totalorder %s15, 1
    %p117 = scmp.ne.s32.totalorder %s112, %s114
    %p118 = scmp.eq.s32.totalorder %s15, 0
    %p119 = por %p117, %p118
    %p120 = scmp.ne.s32.totalorder %s112, %s114
    %p121 = scmp.eq.s32.totalorder %s20, 1
    %p122 = por %p120, %p121
    %p123 = scmp.ne.s32.totalorder %s114, %s115
    %p124 = scmp.eq.s32.totalorder %s20, 0
    %p125 = por %p123, %p124
    %p126 = scmp.ne.s32.totalorder %s114, %s115
    %p127 = scmp.eq.s32.totalorder %s21, 1
    %p128 = por %p126, %p127
    %p130 = scmp.ne.s32.totalorder %s115, %s129
    %p131 = scmp.eq.s32.totalorder %s21, 0
    %p132 = por %p130, %p131
    %s134 = sadd.s32 %s133, 1
    %p137 = scmp.eq.s32.totalorder %s15, 1
    %p138 = scmp.ne.s32.totalorder %s133, %s135
    %p139 = scmp.eq.s32.totalorder %s15, 0
    %p140 = por %p138, %p139
    %p141 = scmp.ne.s32.totalorder %s133, %s135
    %p142 = scmp.eq.s32.totalorder %s20, 1
    %p143 = por %p141, %p142
    %p144 = scmp.ne.s32.totalorder %s135, %s136
    %p145 = scmp.eq.s32.totalorder %s20, 0
    %p146 = por %p144, %p145
    %p147 = scmp.ne.s32.totalorder %s135, %s136
    %p148 = scmp.eq.s32.totalorder %s21, 1
    %p149 = por %p147, %p148
    %p151 = scmp.ne.s32.totalorder %s136, %s150
    %p152 = scmp.eq.s32.totalorder %s21, 0
    %p153 = por %p151, %p152
    %s155 = sadd.s32 %s154, 1
    %p158 = scmp.eq.s32.totalorder %s15, 1
    %p159 = scmp.ne.s32.totalorder %s154, %s156
    %p160 = scmp.eq.s32.totalorder %s15, 0
    %p161 = por %p159, %p160
    %p162 = scmp.ne.s32.totalorder %s154, %s156
    %p163 = scmp.eq.s32.totalorder %s20, 1
    %p164 = por %p162, %p163
    %p165 = scmp.ne.s32.totalorder %s156, %s157
    %p166 = scmp.eq.s32.totalorder %s20, 0
    %p167 = por %p165, %p166
    %p168 = scmp.ne.s32.totalorder %s156, %s157
    %p169 = scmp.eq.s32.totalorder %s21, 1
    %p170 = por %p168, %p169
    %p172 = scmp.ne.s32.totalorder %s157, %s171
    %p173 = scmp.eq.s32.totalorder %s21, 0
    %p174 = por %p172, %p173
    %s175 = ssub.s32 %s22, %s34
    %s176 = ssub.s32 %s23, %s30
    %s177 = sor.u32 %s175, %s176
    %p178 = scmp.eq.s32.totalorder %s177, 0
    %s180 = sadd.s32 %s179, 1
    %s181 = scalar_select %p178, %s179, %s180
    %p184 = pneg %p178
    %p185 = scmp.eq.s32.totalorder %s15, 1
    %p186 = por %p184, %p185
    %p187 = scmp.ne.s32.totalorder %s179, %s182
    %p188 = scmp.eq.s32.totalorder %s15, 0
    %p189 = por %p187, %p188
    %p190 = scmp.ne.s32.totalorder %s179, %s182
    %p191 = scmp.eq.s32.totalorder %s20, 1
    %p192 = por %p190, %p191
    %p193 = scmp.ne.s32.totalorder %s182, %s183
    %p194 = scmp.eq.s32.totalorder %s20, 0
    %p195 = por %p193, %p194
    %p196 = scmp.ne.s32.totalorder %s182, %s183
    %p197 = scmp.eq.s32.totalorder %s21, 1
    %p198 = por %p196, %p197
    %p200 = scmp.ne.s32.totalorder %s183, %s199
    %p201 = scmp.eq.s32.totalorder %s21, 0
    %p202 = por %p200, %p201
    %s203 = ssub.s32 %s22, %s34
    %s204 = ssub.s32 %s23, %s30
    %s205 = sor.u32 %s203, %s204
    %p206 = scmp.eq.s32.totalorder %s205, 0
    %s208 = sadd.s32 %s207, 1
    %s209 = scalar_select %p206, %s207, %s208
    %p212 = pneg %p206
    %p213 = scmp.eq.s32.totalorder %s15, 1
    %p214 = por %p212, %p213
    %p215 = scmp.ne.s32.totalorder %s207, %s210
    %p216 = scmp.eq.s32.totalorder %s15, 0
    %p217 = por %p215, %p216
    %p218 = scmp.ne.s32.totalorder %s207, %s210
    %p219 = scmp.eq.s32.totalorder %s20, 1
    %p220 = por %p218, %p219
    %p221 = scmp.ne.s32.totalorder %s210, %s211
    %p222 = scmp.eq.s32.totalorder %s20, 0
    %p223 = por %p221, %p222
    %p224 = scmp.ne.s32.totalorder %s210, %s211
    %p225 = scmp.eq.s32.totalorder %s21, 1
    %p226 = por %p224, %p225
    %p228 = scmp.ne.s32.totalorder %s211, %s227
    %p229 = scmp.eq.s32.totalorder %s21, 0
    %p230 = por %p228, %p229
    %s231 = ssub.s32 %s22, %s34
    %s232 = ssub.s32 %s23, %s30
    %s233 = sor.u32 %s231, %s232
    %p234 = scmp.eq.s32.totalorder %s233, 0
    %s236 = sadd.s32 %s235, 1
    %s237 = scalar_select %p234, %s235, %s236
    %p240 = pneg %p234
    %p241 = scmp.eq.s32.totalorder %s15, 1
    %p242 = por %p240, %p241
    %p243 = scmp.ne.s32.totalorder %s235, %s238
    %p244 = scmp.eq.s32.totalorder %s15, 0
    %p245 = por %p243, %p244
    %p246 = scmp.ne.s32.totalorder %s235, %s238
    %p247 = scmp.eq.s32.totalorder %s20, 1
    %p248 = por %p246, %p247
    %p249 = scmp.ne.s32.totalorder %s238, %s239
    %p250 = scmp.eq.s32.totalorder %s20, 0
    %p251 = por %p249, %p250
    %p252 = scmp.ne.s32.totalorder %s238, %s239
    %p253 = scmp.eq.s32.totalorder %s21, 1
    %p254 = por %p252, %p253
    %p256 = scmp.ne.s32.totalorder %s239, %s255
    %p257 = scmp.eq.s32.totalorder %s21, 0
    %p258 = por %p256, %p257
    %p259 = scmp.le.s32.totalorder 1, %s15
    %p260 = scmp.lt.s32.totalorder %s15, 3
    %p261 = pnand %p259, %p260
    %p262 = pneg %p261
    // Predicated region
    $region9: #{depthwise_separable_conv1d.2} parent=5 // pred_check
      _
    $region10: #{depthwise_separable_conv1d.2} parent=5 // pred_check_branch
      %264 = sbr.rel (%p261) target = $region12
    $region11: #{depthwise_separable_conv1d.2} parent=5 // pred_region
      %s265 = ssub.s32 %s15, 1
      // Predicated region
      $region13: #{depthwise_separable_conv1d.2} parent=11 // pred_check
        %p266 = pneg %p104
      $region14: #{depthwise_separable_conv1d.2} parent=11 // pred_check_branch
        %268 = sbr.rel (%p266) target = $region16
      $region15: #{depthwise_separable_conv1d.2} parent=11 // pred_region
        _
      $region16: #{depthwise_separable_conv1d.2} parent=11 // pred_fallthru
        _
      // Predicated region
      $region17: #{depthwise_separable_conv1d.2} parent=11 // pred_check
        %p269 = pneg %p125
      $region18: #{depthwise_separable_conv1d.2} parent=11 // pred_check_branch
        %271 = sbr.rel (%p269) target = $region20
      $region19: #{depthwise_separable_conv1d.2} parent=11 // pred_region
        _
      $region20: #{depthwise_separable_conv1d.2} parent=11 // pred_fallthru
        _
      // Predicated region
      $region21: #{depthwise_separable_conv1d.2} parent=11 // pred_check
        %p272 = pneg %p146
      $region22: #{depthwise_separable_conv1d.2} parent=11 // pred_check_branch
        %274 = sbr.rel (%p272) target = $region24
      $region23: #{depthwise_separable_conv1d.2} parent=11 // pred_region
        _
      $region24: #{depthwise_separable_conv1d.2} parent=11 // pred_fallthru
        _
      // Predicated region
      $region25: #{depthwise_separable_conv1d.2} parent=11 // pred_check
        %p275 = pneg %p167
      $region26: #{depthwise_separable_conv1d.2} parent=11 // pred_check_branch
        %277 = sbr.rel (%p275) target = $region28
      $region27: #{depthwise_separable_conv1d.2} parent=11 // pred_region
        _
      $region28: #{depthwise_separable_conv1d.2} parent=11 // pred_fallthru
        _
    $region12: #{depthwise_separable_conv1d.2} parent=5 // pred_fallthru
      _
    %p278 = scmp.lt.s32.totalorder %s15, 2
    // Predicated region
    $region29: #{depthwise_separable_conv1d.2} parent=5 // pred_check
      %p279 = pneg %p278
    $region30: #{depthwise_separable_conv1d.2} parent=5 // pred_check_branch
      %281 = sbr.rel (%p279) target = $region32
    $region31: #{depthwise_separable_conv1d.2} parent=5 // pred_region
      // Predicated region
      $region33: #{depthwise_separable_conv1d.2} parent=31 // pred_check
        %p282 = pneg %p49
      $region34: #{depthwise_separable_conv1d.2} parent=31 // pred_check_branch
        %284 = sbr.rel (%p282) target = $region36
      $region35: #{depthwise_separable_conv1d.2} parent=31 // pred_region
        %p285 = scmp.lt.s32.totalorder %s22, 1
        %s286 = scalar_select %p285, %s22, 1
        %p287 = scmp.lt.s32.totalorder %s23, 1
        %s288 = scalar_select %p287, %s23, 1
        %s289 = smul.addr %s286, 2
        %s290 = sadd.s32 %s288, %s289
        %s291 = smul.addr %s290, 8
        %s292 = scalar_lea.vmem %s0, %s291
      $region36: #{depthwise_separable_conv1d.2} parent=31 // pred_fallthru
        _
      // Predicated region
      $region37: #{depthwise_separable_conv1d.2} parent=31 // pred_check
        %p293 = pneg %p77
      $region38: #{depthwise_separable_conv1d.2} parent=31 // pred_check_branch
        %295 = sbr.rel (%p293) target = $region40
      $region39: #{depthwise_separable_conv1d.2} parent=31 // pred_region
        %p296 = scmp.lt.s32.totalorder %s22, 1
        %s297 = scalar_select %p296, %s22, 1
        %p298 = scmp.lt.s32.totalorder %s23, 0
        %s299 = scalar_select %p298, %s23, 0
        %s300 = sadd.s32 %s299, %s297
        %s301 = smul.addr %s300, 8
        %s302 = scalar_lea.vmem %s1, %s301
      $region40: #{depthwise_separable_conv1d.2} parent=31 // pred_fallthru
        _
    $region32: #{depthwise_separable_conv1d.2} parent=5 // pred_fallthru
      _
    %p303 = scmp.le.s32.totalorder 1, %s15
    %p304 = scmp.lt.s32.totalorder %s15, 3
    %p305 = pnand %p303, %p304
    %p306 = pneg %p305
    // Predicated region
    $region41: #{depthwise_separable_conv1d.2} parent=5 // pred_check
      _
    $region42: #{depthwise_separable_conv1d.2} parent=5 // pred_check_branch
      %308 = sbr.rel (%p305) target = $region44
    $region43: #{depthwise_separable_conv1d.2} parent=5 // pred_region
      %s309 = ssub.s32 %s15, 1
      %p310 = scmp.lt.s32.totalorder %s24, 1
      %s311 = scalar_select %p310, %s24, 1
      %p312 = scmp.lt.s32.totalorder %s25, 1
      %s313 = scalar_select %p312, %s25, 1
      %s314 = smul.addr %s311, 2
      %s315 = sadd.s32 %s313, %s314
      %s316 = smul.addr %s315, 8
      %s317 = scalar_lea.vmem %s0, %s316
      %p318 = pneg %p55
      %p319 = pneg %p52
      %p320 = scmp.lt.s32.totalorder %s24, 1
      %s321 = scalar_select %p320, %s24, 1
      %p322 = scmp.lt.s32.totalorder %s25, 0
      %s323 = scalar_select %p322, %s25, 0
      %s324 = sadd.s32 %s323, %s321
      %s325 = smul.addr %s324, 8
      %s326 = scalar_lea.vmem %s1, %s325
      %p327 = pneg %p83
      %p328 = pneg %p80
      %p329 = pneg %p104
      %p330 = pneg %p101
      %p331 = pneg %p125
      %p332 = pneg %p122
      %p333 = pneg %p146
      %p334 = pneg %p143
      %p335 = pneg %p167
      %p336 = pneg %p164
      %p337 = pneg %p195
      %p338 = pneg %p192
      %p339 = scmp.lt.s32.totalorder %s24, 1
      %s340 = scalar_select %p339, %s24, 1
      %p341 = scmp.lt.s32.totalorder %s25, 0
      %s342 = scalar_select %p341, %s25, 0
      %s343 = sadd.s32 %s342, %s340
      %s344 = smul.addr %s343, 8
      %s345 = scalar_lea.vmem %s6, %s344
      %p346 = pneg %p223
      %p347 = pneg %p220
      %p348 = scmp.lt.s32.totalorder %s24, 1
      %s349 = scalar_select %p348, %s24, 1
      %p350 = scmp.lt.s32.totalorder %s25, 0
      %s351 = scalar_select %p350, %s25, 0
      %s352 = sadd.s32 %s351, %s349
      %s353 = smul.addr %s352, 8
      %s354 = scalar_lea.vmem %s7, %s353
      %p355 = pneg %p251
      %p356 = pneg %p248
      %p357 = scmp.lt.s32.totalorder %s24, 1
      %s358 = scalar_select %p357, %s24, 1
      %p359 = scmp.lt.s32.totalorder %s25, 0
      %s360 = scalar_select %p359, %s25, 0
      %s361 = sadd.s32 %s360, %s358
      %s362 = smul.addr %s361, 8
      %s363 = scalar_lea.vmem %s8, %s362
      %p364 = scmp.lt.s32.totalorder %s24, 1
      %s365 = scalar_select %p364, %s24, 1
      %p366 = scmp.lt.s32.totalorder %s25, 1
      %s367 = scalar_select %p366, %s25, 1
      %s368 = smul.addr %s365, 2
      %s369 = sadd.s32 %s367, %s368
      %s370 = smul.addr %s369, 8
      %s371 = scalar_lea.vmem %s0, %s370
      %p372 = scmp.lt.s32.totalorder %s24, 1
      %s373 = scalar_select %p372, %s24, 1
      %p374 = scmp.lt.s32.totalorder %s25, 0
      %s375 = scalar_select %p374, %s25, 0
      %s376 = sadd.s32 %s375, %s373
      %s377 = smul.addr %s376, 8
      %s378 = scalar_lea.vmem %s1, %s377
      %p379 = scmp.lt.s32.totalorder %s24, 1
      %s380 = scalar_select %p379, %s24, 1
      %p381 = scmp.lt.s32.totalorder %s25, 0
      %s382 = scalar_select %p381, %s25, 0
      %s383 = sadd.s32 %s382, %s380
      %s384 = smul.addr %s383, 8
      %s385 = scalar_lea.vmem %s6, %s384
      %p386 = scmp.lt.s32.totalorder %s24, 1
      %s387 = scalar_select %p386, %s24, 1
      %p388 = scmp.lt.s32.totalorder %s25, 0
      %s389 = scalar_select %p388, %s25, 0
      %s390 = sadd.s32 %s389, %s387
      %s391 = smul.addr %s390, 8
      %s392 = scalar_lea.vmem %s7, %s391
      %p393 = scmp.lt.s32.totalorder %s24, 1
      %s394 = scalar_select %p393, %s24, 1
      %p395 = scmp.lt.s32.totalorder %s25, 0
      %s396 = scalar_select %p395, %s25, 0
      %s397 = sadd.s32 %s396, %s394
      %s398 = smul.addr %s397, 8
      %s399 = scalar_lea.vmem %s8, %s398
      %v400 = vld [vmem:[%s2] sm:$0xff]
      %v401 = vld [vmem:[%s371] sm:$0xff]
      %v402 = vld [vmem:[%s378] sm:$0xff]
      %404 = vset.pattern.permute.xlu0 0
      %405 = vperm.xlu0 %404, %v400
      %v406 = vpop.permute.xlu0 %405
      %v408 = vmul.f32 %v401, %v406
      %v409 = vadd.f32 %v408, 0.0
      %410 = vset.pattern.permute.xlu0 1
      %411 = vperm.xlu0 %410, %v400
      %v412 = vpop.permute.xlu0 %411
      %v414 = vmul.f32 %v401, %v412
      %v415 = vmul.f32 %v402, %v412
      %418 = vrot.lane.b32.xlu0 %v414, 127
      %v419 = vpop.permute.xlu0 %418
      %420 = vrot.lane.b32.xlu0 %v415, 127
      %v421 = vpop.permute.xlu0 %420
      %vm422 = vcmask 1039360
      %v423 = vsel %vm422, %v419, %v421
      %v425 = vadd.f32 %v409, %v423
      %426 = vset.pattern.permute.xlu0 2
      %427 = vperm.xlu0 %426, %v400
      %v428 = vpop.permute.xlu0 %427
      %v430 = vmul.f32 %v401, %v428
      %v431 = vmul.f32 %v402, %v428
      %434 = vrot.lane.b32.xlu0 %v430, 126
      %v435 = vpop.permute.xlu0 %434
      %436 = vrot.lane.b32.xlu0 %v431, 126
      %v437 = vpop.permute.xlu0 %436
      %vm438 = vcmask 1031168
      %v439 = vsel %vm438, %v435, %v437
      %v441 = vadd.f32 %v425, %v439
      %v442 = vld [vmem:[%s3] sm:$0xff]
      %444 = vset.pattern.permute.xlu0 0
      %445 = vperm.xlu0 %444, %v442
      %v446 = vpop.permute.xlu0 %445
      %v448 = vadd.f32 %v441, %v446
      %v449 = vld [vmem:[%s4] sm:$0xff]
      %v450 = vld [vmem:[%s5] sm:$0xff]
      %452 = vset.pattern.permute.xlu0 0
      %453 = vperm.xlu0 %452, %v450
      %v454 = vpop.permute.xlu0 %453
      %vm456 = vcmask 64512
      %v458 = vsel %vm456, %v449, 0
      %460 = vmatprep.subr.mxu0 0.0
      %461 = vmatpush1.msra.mxu0 %v448
      %462 = vmatprep.subr.mxu0 0.0
      %463 = vmatpush1.msra.mxu0 0.0
      %464 = vmatprep.subr.mxu0 0.0
      %465 = vmatpush1.msra.mxu0 0.0
      %466 = vmatprep.subr.mxu0 0.0
      %467 = vmatpush1.msra.mxu0 0.0
      %468 = vmatprep.subr.mxu0 0.0
      %469 = vmatpush1.msra.mxu0 0.0
      %470 = vmatprep.subr.mxu0 0.0
      %471 = vmatpush1.msra.mxu0 0.0
      %472 = vmatprep.subr.mxu0 0.0
      %473 = vmatpush1.msra.mxu0 0.0
      %474 = vmatprep.subr.mxu0 0.0
      %475 = vmatpush1.msra.mxu0 0.0
      %476 = vmatprep.subr.mxu0 0.0
      %477 = vmatpush1.msra.mxu0 0.0
      %478 = vmatprep.subr.mxu0 0.0
      %479 = vmatpush1.msra.mxu0 0.0
      %480 = vmatprep.subr.mxu0 0.0
      %481 = vmatpush1.msra.mxu0 0.0
      %482 = vmatprep.subr.mxu0 0.0
      %483 = vmatpush1.msra.mxu0 0.0
      %484 = vmatprep.subr.mxu0 0.0
      %485 = vmatpush1.msra.mxu0 0.0
      %486 = vmatprep.subr.mxu0 0.0
      %487 = vmatpush1.msra.mxu0 0.0
      %488 = vmatprep.subr.mxu0 0.0
      %489 = vmatpush1.msra.mxu0 0.0
      %490 = vmatprep.subr.mxu0 0.0
      %491 = vmatpush1.msra.mxu0 0.0
      %492 = vmatprep.subr.mxu0 0.0
      %493 = vmatpush1.msra.mxu0 0.0
      %494 = vmatprep.subr.mxu0 0.0
      %495 = vmatpush1.msra.mxu0 0.0
      %496 = vmatprep.subr.mxu0 0.0
      %497 = vmatpush1.msra.mxu0 0.0
      %498 = vmatprep.subr.mxu0 0.0
      %499 = vmatpush1.msra.mxu0 0.0
      %500 = vmatprep.subr.mxu0 0.0
      %501 = vmatpush1.msra.mxu0 0.0
      %502 = vmatprep.subr.mxu0 0.0
      %503 = vmatpush1.msra.mxu0 0.0
      %504 = vmatprep.subr.mxu0 0.0
      %505 = vmatpush1.msra.mxu0 0.0
      %506 = vmatprep.subr.mxu0 0.0
      %507 = vmatpush1.msra.mxu0 0.0
      %508 = vmatprep.subr.mxu0 0.0
      %509 = vmatpush1.msra.mxu0 0.0
      %510 = vmatprep.subr.mxu0 0.0
      %511 = vmatpush1.msra.mxu0 0.0
      %512 = vmatprep.subr.mxu0 0.0
      %513 = vmatpush1.msra.mxu0 0.0
      %514 = vmatprep.subr.mxu0 0.0
      %515 = vmatpush1.msra.mxu0 0.0
      %516 = vmatprep.subr.mxu0 0.0
      %517 = vmatpush1.msra.mxu0 0.0
      %518 = vmatprep.subr.mxu0 0.0
      %519 = vmatpush1.msra.mxu0 0.0
      %520 = vmatprep.subr.mxu0 0.0
      %521 = vmatpush1.msra.mxu0 0.0
      %522 = vmatprep.subr.mxu0 0.0
      %523 = vmatpush1.msra.mxu0 0.0
      %524 = vmatprep.mubr.f32.mxu0 0.0
      %525 = vmatmul.mubr.f32.gmra.mrb[0].mxu0 %v458
      %v526 = vpop.f32.mrb[0].mxu0
      %v527 = vadd.f32 %v454, %v526
      %v528 = vpop.f32.mrb[0].mxu0
      %529 = vdwg.mxu0
      %530 = vst [vmem:[%s385] sm:$0xff] %v527
      %p531 = scmp.lt.s32.totalorder %s25, 0
      // Predicated region
      $region45: #{depthwise_separable_conv1d.2} parent=43 // pred_check
        %p532 = pneg %p531
      $region46: #{depthwise_separable_conv1d.2} parent=43 // pred_check_branch
        %534 = sbr.rel (%p532) target = $region48
      $region47: #{depthwise_separable_conv1d.2} parent=43 // pred_region
        %535 = vadd.xlane.f32.xlu0 %v527
        %v536 = vpop.xlane.xlu0 %535
        %vm537 = vcmask 7168
        %538 = vst.msk [vmem:[%s392] sm:$0xff] %vm537, %v536
        %v539 = vmul.f32 %v527, %v527
        %540 = vadd.xlane.f32.xlu0 %v539
        %v541 = vpop.xlane.xlu0 %540
        %542 = vst.msk [vmem:[%s399] sm:$0xff] %vm537, %v541
      $region48: #{depthwise_separable_conv1d.2} parent=43 // pred_fallthru
        _
      %p543 = scmp.eq.s32.totalorder %s25, 0
      // Predicated region
      $region49: #{depthwise_separable_conv1d.2} parent=43 // pred_check
        %p544 = pneg %p543
      $region50: #{depthwise_separable_conv1d.2} parent=43 // pred_check_branch
        %546 = sbr.rel (%p544) target = $region52
      $region51: #{depthwise_separable_conv1d.2} parent=43 // pred_region
        %v547 = vlaneseq
        %v548 = vand.u32 %v547, 127
        %vm549 = vcmp.lt.s32.totalorder %v548, 16
        %v550 = vsel %vm549, 1, 0
        %v551 = vcvt.s32.f32 %v550
        %v552 = vmul.f32 %v527, %v551
        %553 = vadd.xlane.f32.xlu0 %v552
        %v554 = vpop.xlane.xlu0 %553
        %vm555 = vcmask 7168
        %556 = vst.msk [vmem:[%s392] sm:$0xff] %vm555, %v554
        %v557 = vmul.f32 %v552, %v527
        %558 = vadd.xlane.f32.xlu0 %v557
        %v559 = vpop.xlane.xlu0 %558
        %560 = vst.msk [vmem:[%s399] sm:$0xff] %vm555, %v559
      $region52: #{depthwise_separable_conv1d.2} parent=43 // pred_fallthru
        _
      %p561 = scmp.lt.s32.totalorder %s24, 1
      %s562 = scalar_select %p561, %s24, 1
      %p563 = scmp.lt.s32.totalorder %s25, 0
      %s564 = scalar_select %p563, %s25, 0
      %s565 = sadd.s32 %s564, %s562
      %s566 = smul.addr %s565, 8
      %s567 = scalar_lea.vmem %s6, %s566
      %p568 = scmp.lt.s32.totalorder %s24, 1
      %s569 = scalar_select %p568, %s24, 1
      %p570 = scmp.lt.s32.totalorder %s25, 0
      %s571 = scalar_select %p570, %s25, 0
      %s572 = sadd.s32 %s571, %s569
      %s573 = smul.addr %s572, 8
      %s574 = scalar_lea.vmem %s7, %s573
      %p575 = scmp.lt.s32.totalorder %s24, 1
      %s576 = scalar_select %p575, %s24, 1
      %p577 = scmp.lt.s32.totalorder %s25, 0
      %s578 = scalar_select %p577, %s25, 0
      %s579 = sadd.s32 %s578, %s576
      %s580 = smul.addr %s579, 8
      %s581 = scalar_lea.vmem %s8, %s580
      // Predicated region
      $region53: #{depthwise_separable_conv1d.2} parent=43 // pred_check
        %p582 = pneg %p192
      $region54: #{depthwise_separable_conv1d.2} parent=43 // pred_check_branch
        %584 = sbr.rel (%p582) target = $region56
      $region55: #{depthwise_separable_conv1d.2} parent=43 // pred_region
        _
      $region56: #{depthwise_separable_conv1d.2} parent=43 // pred_fallthru
        _
      // Predicated region
      $region57: #{depthwise_separable_conv1d.2} parent=43 // pred_check
        %p585 = pneg %p220
      $region58: #{depthwise_separable_conv1d.2} parent=43 // pred_check_branch
        %587 = sbr.rel (%p585) target = $region60
      $region59: #{depthwise_separable_conv1d.2} parent=43 // pred_region
        _
      $region60: #{depthwise_separable_conv1d.2} parent=43 // pred_fallthru
        _
      // Predicated region
      $region61: #{depthwise_separable_conv1d.2} parent=43 // pred_check
        %p588 = pneg %p248
      $region62: #{depthwise_separable_conv1d.2} parent=43 // pred_check_branch
        %590 = sbr.rel (%p588) target = $region64
      $region63: #{depthwise_separable_conv1d.2} parent=43 // pred_region
        _
      $region64: #{depthwise_separable_conv1d.2} parent=43 // pred_fallthru
        _
    $region44: #{depthwise_separable_conv1d.2} parent=5 // pred_fallthru
      _
    %p591 = scmp.le.s32.totalorder 2, %s15
    // Predicated region
    $region65: #{depthwise_separable_conv1d.2} parent=5 // pred_check
      %p592 = pneg %p591
    $region66: #{depthwise_separable_conv1d.2} parent=5 // pred_check_branch
      %594 = sbr.rel (%p592) target = $region68
    $region67: #{depthwise_separable_conv1d.2} parent=5 // pred_region
      %s595 = ssub.s32 %s15, 2
      // Predicated region
      $region69: #{depthwise_separable_conv1d.2} parent=67 // pred_check
        %p596 = pneg %p198
      $region70: #{depthwise_separable_conv1d.2} parent=67 // pred_check_branch
        %598 = sbr.rel (%p596) target = $region72
      $region71: #{depthwise_separable_conv1d.2} parent=67 // pred_region
        %p599 = scmp.lt.s32.totalorder %s26, 1
        %s600 = scalar_select %p599, %s26, 1
        %p601 = scmp.lt.s32.totalorder %s27, 0
        %s602 = scalar_select %p601, %s27, 0
        %s603 = sadd.s32 %s602, %s600
        %s604 = smul.addr %s603, 8
        %s605 = scalar_lea.vmem %s6, %s604
      $region72: #{depthwise_separable_conv1d.2} parent=67 // pred_fallthru
        _
      // Predicated region
      $region73: #{depthwise_separable_conv1d.2} parent=67 // pred_check
        %p606 = pneg %p226
      $region74: #{depthwise_separable_conv1d.2} parent=67 // pred_check_branch
        %608 = sbr.rel (%p606) target = $region76
      $region75: #{depthwise_separable_conv1d.2} parent=67 // pred_region
        %p609 = scmp.lt.s32.totalorder %s26, 1
        %s610 = scalar_select %p609, %s26, 1
        %p611 = scmp.lt.s32.totalorder %s27, 0
        %s612 = scalar_select %p611, %s27, 0
        %s613 = sadd.s32 %s612, %s610
        %s614 = smul.addr %s613, 8
        %s615 = scalar_lea.vmem %s7, %s614
      $region76: #{depthwise_separable_conv1d.2} parent=67 // pred_fallthru
        _
      // Predicated region
      $region77: #{depthwise_separable_conv1d.2} parent=67 // pred_check
        %p616 = pneg %p254
      $region78: #{depthwise_separable_conv1d.2} parent=67 // pred_check_branch
        %618 = sbr.rel (%p616) target = $region80
      $region79: #{depthwise_separable_conv1d.2} parent=67 // pred_region
        %p619 = scmp.lt.s32.totalorder %s26, 1
        %s620 = scalar_select %p619, %s26, 1
        %p621 = scmp.lt.s32.totalorder %s27, 0
        %s622 = scalar_select %p621, %s27, 0
        %s623 = sadd.s32 %s622, %s620
        %s624 = smul.addr %s623, 8
        %s625 = scalar_lea.vmem %s8, %s624
      $region80: #{depthwise_separable_conv1d.2} parent=67 // pred_fallthru
        _
    $region68: #{depthwise_separable_conv1d.2} parent=5 // pred_fallthru
      _
  $region6: #{depthwise_separable_conv1d.2} parent=0 // loop_footer
    %s19 = sadd.s32 1, %s15
  $region7: #{depthwise_separable_conv1d.2} parent=0 // loop_footer_branch
    %14 = sbr.rel target = $region3
  $region8: #{depthwise_separable_conv1d.2} parent=0 // loop_exit
    _

</llo_original>
